<compile_context>
chip_gen: v5e
topology: v5e:2x2
jax: 0.10.0
libtpu: 0.0.40
codegen_flags: <defaults>
</compile_context>

<pallas_src>
import jax
import jax.numpy as jnp
from jax import lax
from jax.experimental import pallas as pl
from jax.experimental.pallas import tpu as pltpu

HIDDEN_DIM = 256
_LANE = 128


def _round_up(x, m):
    return (x + m - 1) // m * m


def _qmodel_kernel(x_ref, w1_ref, b1_ref, w2_ref, b2_ref, outT_ref):
    # x:   (TB, in_dim)   f32   (natural PyTorch layout, streamed per grid step)
    # w1:  (H, in_dim)    bf16/f32   (PyTorch (out, in) layout, VMEM-resident)
    # b1:  (H, 1)         f32
    # w2:  (nbits, H)     bf16/f32
    # b2:  (nbits, 1)     f32
    # out: (nbits, TB)    f32   (batch on the lane axis -> lane-dense stores)
    x = x_ref[...].astype(w1_ref.dtype)                      # cheap VPU cast in-kernel
    # h^T = W1 @ x^T without a physical transpose: contract dim 1 of both operands.
    h = lax.dot_general(
        w1_ref[...], x,
        dimension_numbers=(((1,), (1,)), ((), ())),
        preferred_element_type=jnp.float32)                  # (H, TB), f32 accumulate
    h = jnp.maximum(h + b1_ref[...], 0.0)                    # bias + ReLU on VPU (f32)
    h = h.astype(w2_ref.dtype)                               # back to bf16 for MXU
    o = jnp.dot(w2_ref[...], h, preferred_element_type=jnp.float32)   # (nbits, TB)
    outT_ref[...] = (o + b2_ref[...]).astype(outT_ref.dtype)


def prepare_params(w1, b1, w2, b2, *, use_bf16=True):
    """Cast/reshape params once (hoisted out of the per-call path)."""
    cdt = jnp.bfloat16 if use_bf16 else jnp.float32
    H = w1.shape[0]
    nb = w2.shape[0]
    return (w1.astype(cdt),
            b1.reshape(H, 1).astype(jnp.float32),
            w2.astype(cdt),
            b2.reshape(nb, 1).astype(jnp.float32))


def _pick_batch_tile(B, in_dim, H, num_bits, block_b):
    """Lane-dense batch tile: multiple of 128, >=2 tiles when B allows (v7x
    megacore), capped by block_b and a generation-safe VMEM budget."""
    B128 = _round_up(max(B, 1), _LANE)
    if B128 >= 2 * _LANE:
        tb_target = _round_up(pl.cdiv(B128, 2), _LANE)   # at least 2 grid steps
    else:
        tb_target = B128
    TB = min(_round_up(max(block_b, _LANE), _LANE), tb_target)

    # Per-lane VMEM bytes: double-buffered x/out tiles + live f32 h + bf16 copies.
    bytes_per_lane = (2 * in_dim * 4        # x tile (double-buffered, f32)
                      + 2 * num_bits * 4    # out tile (double-buffered, f32)
                      + H * 4 + H * 2       # h in f32 + bf16 recast
                      + in_dim * 2)         # x bf16 cast
    vmem_budget = 20 * 1024 * 1024          # safe under the 32 MiB scoped limit
    max_tb = max(_LANE, (vmem_budget // bytes_per_lane) // _LANE * _LANE)
    return max(_LANE, min(TB, max_tb))


def qmodel_forward(x, params, *, block_b=8192, transposed_output=False):
    """Q-model forward.

    x:      (B, 2*num_bits) float32 (natural PyTorch layout)
    params: output of prepare_params(w1, b1, w2, b2)
    returns (B, num_bits) float32  == relu(x @ w1.T + b1) @ w2.T + b2
            (or (num_bits, B) if transposed_output=True, for fused consumers)
    """
    w1c, b1c, w2c, b2c = params
    B, in_dim = x.shape
    H = w1c.shape[0]
    num_bits = w2c.shape[0]
    assert w1c.shape == (H, in_dim) and b1c.shape == (H, 1)
    assert w2c.shape == (num_bits, H) and b2c.shape == (num_bits, 1)

    TB = _pick_batch_tile(B, in_dim, H, num_bits, block_b)
    grid = (pl.cdiv(B, TB),)

    outT = pl.pallas_call(
        _qmodel_kernel,
        out_shape=jax.ShapeDtypeStruct((num_bits, B), jnp.float32),
        grid_spec=pl.GridSpec(
            grid=grid,
            in_specs=[
                pl.BlockSpec((TB, in_dim), lambda i: (i, 0)),    # x tile (streams)
                pl.BlockSpec((H, in_dim), lambda i: (0, 0)),     # W1, VMEM-resident
                pl.BlockSpec((H, 1), lambda i: (0, 0)),          # b1, VMEM-resident
                pl.BlockSpec((num_bits, H), lambda i: (0, 0)),   # W2, VMEM-resident
                pl.BlockSpec((num_bits, 1), lambda i: (0, 0)),   # b2, VMEM-resident
            ],
            out_specs=pl.BlockSpec((num_bits, TB), lambda i: (0, i)),
        ),
        compiler_params=pltpu.CompilerParams(
            dimension_semantics=("parallel",),       # batch tiles shard across TCs
            vmem_limit_bytes=32 * 1024 * 1024,       # room for TB up to ~8-12K on v5e
        ),
    )(x, w1c, b1c, w2c, b2c)

    if transposed_output:
        return outT                                  # (num_bits, B), lane-dense
    # Small (num_bits x B) transpose; fuse into the consumer when possible.
    return jnp.swapaxes(outT, 0, 1)                  # (B, num_bits)


def init_params(key, num_bits, hidden_dim=HIDDEN_DIM):
    """Deterministic init mimicking PyTorch Linear default U(-1/sqrt(fan_in), +).
    Weights kept in PyTorch's native (out, in) layout."""
    in_dim = 2 * num_bits
    k1, k2, k3, k4 = jax.random.split(key, 4)
    bound1 = 1.0 / jnp.sqrt(in_dim)
    bound2 = 1.0 / jnp.sqrt(hidden_dim)
    w1 = jax.random.uniform(k1, (hidden_dim, in_dim), jnp.float32, -bound1, bound1)
    b1 = jax.random.uniform(k2, (hidden_dim,), jnp.float32, -bound1, bound1)
    w2 = jax.random.uniform(k3, (num_bits, hidden_dim), jnp.float32, -bound2, bound2)
    b2 = jax.random.uniform(k4, (num_bits,), jnp.float32, -bound2, bound2)
    return w1, b1, w2, b2


if __name__ == "__main__":
    num_bits = 8

    key = jax.random.PRNGKey(0)
    kx, kx2, kp = jax.random.split(key, 3)
    w1, b1, w2, b2 = init_params(kp, num_bits)
    params = prepare_params(w1, b1, w2, b2, use_bf16=True)   # cast once, reuse

    def ref_fn(xv):
        return jnp.maximum(xv @ w1.T + b1, 0.0) @ w2.T + b2

    # Small case (single tile, overhanging batch block).
    batch = 8
    x = jax.random.normal(kx, (batch, 2 * num_bits), jnp.float32)
    out = qmodel_forward(x, params)
    jax.block_until_ready(out)
    ref = ref_fn(x)
    assert out.shape == (batch, num_bits)
    # bf16 matmuls with f32 accumulation -> relaxed tolerance.
    assert jnp.allclose(out, ref, atol=3e-2, rtol=3e-2), float(
        jnp.max(jnp.abs(out - ref)))

    # Multi-tile case with a non-divisible tail (exercises tiling + ragged edge).
    batch2 = 300
    x2 = jax.random.normal(kx2, (batch2, 2 * num_bits), jnp.float32)
    out2 = qmodel_forward(x2, params, block_b=128)
    jax.block_until_ready(out2)
    ref2 = ref_fn(x2)
    assert out2.shape == (batch2, num_bits)
    assert jnp.allclose(out2, ref2, atol=3e-2, rtol=3e-2), float(
        jnp.max(jnp.abs(out2 - ref2)))

    print("KERNEL_OK")
</pallas_src>

<mosaic_0001>
module attributes {stable_mosaic.version = 11 : i64} {
  func.func @_qmodel_kernel(%arg0: i32, %arg1: memref<128x16xf32, #tpu.memory_space<vmem>>, %arg2: memref<256x16xbf16, #tpu.memory_space<vmem>>, %arg3: memref<256x1xf32, #tpu.memory_space<vmem>>, %arg4: memref<8x256xbf16, #tpu.memory_space<vmem>>, %arg5: memref<8x1xf32, #tpu.memory_space<vmem>>, %arg6: memref<8x128xf32, #tpu.memory_space<vmem>>) attributes {dimension_semantics = [#tpu.dimension_semantics<parallel>], iteration_bounds = array<i64: 1>, scalar_prefetch = 0 : i64, scratch_operands = 0 : i64, tpu.core_type = #tpu.core_type<tc>, window_params = [{transform_indices = @transform_0, window_bounds = array<i64: 128, 16>}, {pipeline_mode = #tpu.pipeline_mode<synchronous>, transform_indices = @transform_1, window_bounds = array<i64: 256, 16>}, {pipeline_mode = #tpu.pipeline_mode<synchronous>, transform_indices = @transform_2, window_bounds = array<i64: 256, 1>}, {pipeline_mode = #tpu.pipeline_mode<synchronous>, transform_indices = @transform_3, window_bounds = array<i64: 8, 256>}, {pipeline_mode = #tpu.pipeline_mode<synchronous>, transform_indices = @transform_4, window_bounds = array<i64: 8, 1>}, {transform_indices = @transform_5, window_bounds = array<i64: 8, 128>}]} {
    %c0 = arith.constant 0 : index
    %c0_0 = arith.constant 0 : index
    %0 = vector.load %arg1[%c0, %c0_0] : memref<128x16xf32, #tpu.memory_space<vmem>>, vector<128x16xf32>
    %1 = arith.truncf %0 : vector<128x16xf32> to vector<128x16xbf16>
    %c0_1 = arith.constant 0 : index
    %c0_2 = arith.constant 0 : index
    %2 = vector.load %arg2[%c0_1, %c0_2] : memref<256x16xbf16, #tpu.memory_space<vmem>>, vector<256x16xbf16>
    %cst = arith.constant dense<0.000000e+00> : vector<256x128xf32>
    %3 = tpu.matmul %2, %1, %cst {dimension_numbers = #tpu.dot_dimension_numbers<[1], [1], [0], [0], [0, 0, 1, 0], [], []>} : vector<256x16xbf16>, vector<128x16xbf16>, vector<256x128xf32> -> vector<256x128xf32>
    %c0_3 = arith.constant 0 : index
    %c0_4 = arith.constant 0 : index
    %4 = vector.load %arg3[%c0_3, %c0_4] : memref<256x1xf32, #tpu.memory_space<vmem>>, vector<256x1xf32>
    %5 = vector.broadcast %4 : vector<256x1xf32> to vector<256x128xf32>
    %6 = arith.addf %3, %5 : vector<256x128xf32>
    %cst_5 = arith.constant 0.000000e+00 : f32
    %7 = vector.broadcast %cst_5 : f32 to vector<256x128xf32>
    %8 = arith.maximumf %6, %7 : vector<256x128xf32>
    %9 = arith.truncf %8 : vector<256x128xf32> to vector<256x128xbf16>
    %c0_6 = arith.constant 0 : index
    %c0_7 = arith.constant 0 : index
    %10 = vector.load %arg4[%c0_6, %c0_7] : memref<8x256xbf16, #tpu.memory_space<vmem>>, vector<8x256xbf16>
    %cst_8 = arith.constant dense<0.000000e+00> : vector<8x128xf32>
    %11 = tpu.matmul %10, %9, %cst_8 {dimension_numbers = #tpu.dot_dimension_numbers<[1], [0], [0], [1], [0, 0, 1, 1], [], []>} : vector<8x256xbf16>, vector<256x128xbf16>, vector<8x128xf32> -> vector<8x128xf32>
    %c0_9 = arith.constant 0 : index
    %c0_10 = arith.constant 0 : index
    %12 = vector.load %arg5[%c0_9, %c0_10] : memref<8x1xf32, #tpu.memory_space<vmem>>, vector<8x1xf32>
    %13 = vector.broadcast %12 : vector<8x1xf32> to vector<8x128xf32>
    %14 = arith.addf %11, %13 : vector<8x128xf32>
    %c0_11 = arith.constant 0 : index
    %c0_12 = arith.constant 0 : index
    %15 = vector.load %arg6[%c0_11, %c0_12] : memref<8x128xf32, #tpu.memory_space<vmem>>, vector<8x128xf32>
    tpu.vector_store %arg6[%c0_11, %c0_12], %14 {strides = array<i32>} : memref<8x128xf32, #tpu.memory_space<vmem>>, vector<8x128xf32>,
    return
  }
  func.func @transform_0(%arg0: i32) -> (i32, i32) {
    %c0_i32 = arith.constant 0 : i32
    %c0_i32_0 = arith.constant 0 : i32
    return %arg0, %c0_i32 : i32, i32
  }
  func.func @transform_1(%arg0: i32) -> (i32, i32) {
    %c0_i32 = arith.constant 0 : i32
    %c0_i32_0 = arith.constant 0 : i32
    %c0_i32_1 = arith.constant 0 : i32
    return %c0_i32, %c0_i32_0 : i32, i32
  }
  func.func @transform_2(%arg0: i32) -> (i32, i32) {
    %c0_i32 = arith.constant 0 : i32
    %c0_i32_0 = arith.constant 0 : i32
    %c0_i32_1 = arith.constant 0 : i32
    return %c0_i32, %c0_i32_0 : i32, i32
  }
  func.func @transform_3(%arg0: i32) -> (i32, i32) {
    %c0_i32 = arith.constant 0 : i32
    %c0_i32_0 = arith.constant 0 : i32
    %c0_i32_1 = arith.constant 0 : i32
    return %c0_i32, %c0_i32_0 : i32, i32
  }
  func.func @transform_4(%arg0: i32) -> (i32, i32) {
    %c0_i32 = arith.constant 0 : i32
    %c0_i32_0 = arith.constant 0 : i32
    %c0_i32_1 = arith.constant 0 : i32
    return %c0_i32, %c0_i32_0 : i32, i32
  }
  func.func @transform_5(%arg0: i32) -> (i32, i32) {
    %c0_i32 = arith.constant 0 : i32
    %c0_i32_0 = arith.constant 0 : i32
    return %c0_i32, %arg0 : i32, i32
  }
}

</mosaic_0001>

<llo_original>
// kernel: tpu_custom_call.1
$region0: #{tpu_custom_call.1}
  #allocation0 [shape = 'u32[]', space=smem, size = 0x4, offset = 0x4, fixed_abs, tag = 'smem constant byte address 0x4 - core index']
  #allocation1 [shape = 'u32[72,128]{1,0:T(1,128)}', space=vmem, size = 0x9000, scoped, tag = 'internal scratch']
  %s0 = inlined_call_operand.vmem [shape: f32[8,16], index: 0, kind: input, shape index: {}]
  %s1 = inlined_call_operand.vmem [shape: bf16[256,16], index: 1, kind: input, shape index: {}]
  %s2 = inlined_call_operand.vmem [shape: f32[256,1], index: 2, kind: input, shape index: {}]
  %s3 = inlined_call_operand.vmem [shape: bf16[8,256], index: 3, kind: input, shape index: {}]
  %s4 = inlined_call_operand.vmem [shape: f32[8,1], index: 4, kind: input, shape index: {}]
  %s5 = inlined_call_operand.hbm [shape: f32[8,8], index: 5, kind: output, shape index: {}]
  %s6 = sld [smem:[#allocation0]]
  $region30: #{tpu_custom_call.1} parent=0
    _
  %s8 = ssub.s32 1, %s6
  %s9 = scalar_select 0, %s8, %s6
  $region1: #{tpu_custom_call.1} parent=0
    #allocation2 [shape = 'u8[4096]{0}', space=vmem, size = 0x1000, scoped, tag = 'output window, operand 0, single buffered']
    #allocation3 [shape = 's32[1]{0}', space=sflag, size = 0x4, scoped, tag = 'scoped memory for tpu_custom_call.1']
    %10 = vsyncpa [#allocation3], 0
    // Predicated region
    $region2: #{tpu_custom_call.1} parent=1 // pred_check
      _
    $region3: #{tpu_custom_call.1} parent=1 // pred_check_branch
      %12 = sbr.rel (0) target = $region5
    $region4: #{tpu_custom_call.1} parent=1 // pred_region
      _
    $region5: #{tpu_custom_call.1} parent=1 // pred_fallthru
      _
    // Predicated region
    $region6: #{tpu_custom_call.1} parent=1 // pred_check
      _
    $region7: #{tpu_custom_call.1} parent=1 // pred_check_branch
      %14 = sbr.rel (0) target = $region9
    $region8: #{tpu_custom_call.1} parent=1 // pred_region
      _
    $region9: #{tpu_custom_call.1} parent=1 // pred_fallthru
      _
    // Predicated region
    $region10: #{tpu_custom_call.1} parent=1 // pred_check
      _
    $region11: #{tpu_custom_call.1} parent=1 // pred_check_branch
      %16 = sbr.rel (0) target = $region13
    $region12: #{tpu_custom_call.1} parent=1 // pred_region
      _
    $region13: #{tpu_custom_call.1} parent=1 // pred_fallthru
      _
    // Predicated region
    $region14: #{tpu_custom_call.1} parent=1 // pred_check
      _
    $region15: #{tpu_custom_call.1} parent=1 // pred_check_branch
      %18 = sbr.rel (0) target = $region17
    $region16: #{tpu_custom_call.1} parent=1 // pred_region
      _
    $region17: #{tpu_custom_call.1} parent=1 // pred_fallthru
      _
    // Predicated region
    $region18: #{tpu_custom_call.1} parent=1 // pred_check
      _
    $region19: #{tpu_custom_call.1} parent=1 // pred_check_branch
      %20 = sbr.rel (0) target = $region21
    $region20: #{tpu_custom_call.1} parent=1 // pred_region
      _
    $region21: #{tpu_custom_call.1} parent=1 // pred_fallthru
      _
    %v21 = vld [vmem:[%s0] sm:$0xff]
    %v22 = vld [vmem:[%s0 + $0x8] sm:$0xff]
    %v23 = vld [vmem:[%s0 + $0x10] sm:$0xff]
    %v24 = vld [vmem:[%s0 + $0x18] sm:$0xff]
    %v25 = vld [vmem:[%s0 + $0x20] sm:$0xff]
    %v26 = vld [vmem:[%s0 + $0x28] sm:$0xff]
    %v27 = vld [vmem:[%s0 + $0x30] sm:$0xff]
    %v28 = vld [vmem:[%s0 + $0x38] sm:$0xff]
    %v29 = vld [vmem:[%s0 + $0x40] sm:$0xff]
    %v30 = vld [vmem:[%s0 + $0x48] sm:$0xff]
    %v31 = vld [vmem:[%s0 + $0x50] sm:$0xff]
    %v32 = vld [vmem:[%s0 + $0x58] sm:$0xff]
    %v33 = vld [vmem:[%s0 + $0x60] sm:$0xff]
    %v34 = vld [vmem:[%s0 + $0x68] sm:$0xff]
    %v35 = vld [vmem:[%s0 + $0x70] sm:$0xff]
    %v36 = vld [vmem:[%s0 + $0x78] sm:$0xff]
    %v37 = vpack.c.bf16 %v22, %v21
    %v38 = vpack.c.bf16 %v24, %v23
    %v39 = vpack.c.bf16 %v26, %v25
    %v40 = vpack.c.bf16 %v28, %v27
    %v41 = vpack.c.bf16 %v30, %v29
    %v42 = vpack.c.bf16 %v32, %v31
    %v43 = vpack.c.bf16 %v34, %v33
    %v44 = vpack.c.bf16 %v36, %v35
    %v45 = vld [vmem:[%s1] sm:$0xf]
    %v46 = vld [vmem:[%s1 + $0x4] sm:$0xf]
    %v47 = vld [vmem:[%s1 + $0x8] sm:$0xf]
    %v48 = vld [vmem:[%s1 + $0xc] sm:$0xf]
    %v49 = vld [vmem:[%s1 + $0x10] sm:$0xf]
    %v50 = vld [vmem:[%s1 + $0x14] sm:$0xf]
    %v51 = vld [vmem:[%s1 + $0x18] sm:$0xf]
    %v52 = vld [vmem:[%s1 + $0x1c] sm:$0xf]
    %v53 = vld [vmem:[%s1 + $0x20] sm:$0xf]
    %v54 = vld [vmem:[%s1 + $0x24] sm:$0xf]
    %v55 = vld [vmem:[%s1 + $0x28] sm:$0xf]
    %v56 = vld [vmem:[%s1 + $0x2c] sm:$0xf]
    %v57 = vld [vmem:[%s1 + $0x30] sm:$0xf]
    %v58 = vld [vmem:[%s1 + $0x34] sm:$0xf]
    %v59 = vld [vmem:[%s1 + $0x38] sm:$0xf]
    %v60 = vld [vmem:[%s1 + $0x3c] sm:$0xf]
    %v61 = vld [vmem:[%s1 + $0x40] sm:$0xf]
    %v62 = vld [vmem:[%s1 + $0x44] sm:$0xf]
    %v63 = vld [vmem:[%s1 + $0x48] sm:$0xf]
    %v64 = vld [vmem:[%s1 + $0x4c] sm:$0xf]
    %v65 = vld [vmem:[%s1 + $0x50] sm:$0xf]
    %v66 = vld [vmem:[%s1 + $0x54] sm:$0xf]
    %v67 = vld [vmem:[%s1 + $0x58] sm:$0xf]
    %v68 = vld [vmem:[%s1 + $0x5c] sm:$0xf]
    %v69 = vld [vmem:[%s1 + $0x60] sm:$0xf]
    %v70 = vld [vmem:[%s1 + $0x64] sm:$0xf]
    %v71 = vld [vmem:[%s1 + $0x68] sm:$0xf]
    %v72 = vld [vmem:[%s1 + $0x6c] sm:$0xf]
    %v73 = vld [vmem:[%s1 + $0x70] sm:$0xf]
    %v74 = vld [vmem:[%s1 + $0x74] sm:$0xf]
    %v75 = vld [vmem:[%s1 + $0x78] sm:$0xf]
    %v76 = vld [vmem:[%s1 + $0x7c] sm:$0xf]
    %v77 = vld [vmem:[%s2] sm:$0xff]
    %v78 = vld [vmem:[%s2 + $0x8] sm:$0xff]
    %v79 = vld [vmem:[%s2 + $0x10] sm:$0xff]
    %v80 = vld [vmem:[%s2 + $0x18] sm:$0xff]
    %v81 = vld [vmem:[%s2 + $0x20] sm:$0xff]
    %v82 = vld [vmem:[%s2 + $0x28] sm:$0xff]
    %v83 = vld [vmem:[%s2 + $0x30] sm:$0xff]
    %v84 = vld [vmem:[%s2 + $0x38] sm:$0xff]
    %v85 = vld [vmem:[%s2 + $0x40] sm:$0xff]
    %v86 = vld [vmem:[%s2 + $0x48] sm:$0xff]
    %v87 = vld [vmem:[%s2 + $0x50] sm:$0xff]
    %v88 = vld [vmem:[%s2 + $0x58] sm:$0xff]
    %v89 = vld [vmem:[%s2 + $0x60] sm:$0xff]
    %v90 = vld [vmem:[%s2 + $0x68] sm:$0xff]
    %v91 = vld [vmem:[%s2 + $0x70] sm:$0xff]
    %v92 = vld [vmem:[%s2 + $0x78] sm:$0xff]
    %v93 = vld [vmem:[%s2 + $0x80] sm:$0xff]
    %v94 = vld [vmem:[%s2 + $0x88] sm:$0xff]
    %v95 = vld [vmem:[%s2 + $0x90] sm:$0xff]
    %v96 = vld [vmem:[%s2 + $0x98] sm:$0xff]
    %v97 = vld [vmem:[%s2 + $0xa0] sm:$0xff]
    %v98 = vld [vmem:[%s2 + $0xa8] sm:$0xff]
    %v99 = vld [vmem:[%s2 + $0xb0] sm:$0xff]
    %v100 = vld [vmem:[%s2 + $0xb8] sm:$0xff]
    %v101 = vld [vmem:[%s2 + $0xc0] sm:$0xff]
    %v102 = vld [vmem:[%s2 + $0xc8] sm:$0xff]
    %v103 = vld [vmem:[%s2 + $0xd0] sm:$0xff]
    %v104 = vld [vmem:[%s2 + $0xd8] sm:$0xff]
    %v105 = vld [vmem:[%s2 + $0xe0] sm:$0xff]
    %v106 = vld [vmem:[%s2 + $0xe8] sm:$0xff]
    %v107 = vld [vmem:[%s2 + $0xf0] sm:$0xff]
    %v108 = vld [vmem:[%s2 + $0xf8] sm:$0xff]
    %110 = vset.pattern.permute.xlu0 0
    %111 = vperm.xlu0 %110, %v77
    %v112 = vpop.permute.xlu0 %111
    %115 = vset.pattern.permute.xlu0 0
    %116 = vperm.xlu0 %115, %v78
    %v117 = vpop.permute.xlu0 %116
    %120 = vset.pattern.permute.xlu0 0
    %121 = vperm.xlu0 %120, %v79
    %v122 = vpop.permute.xlu0 %121
    %125 = vset.pattern.permute.xlu0 0
    %126 = vperm.xlu0 %125, %v80
    %v127 = vpop.permute.xlu0 %126
    %130 = vset.pattern.permute.xlu0 0
    %131 = vperm.xlu0 %130, %v81
    %v132 = vpop.permute.xlu0 %131
    %135 = vset.pattern.permute.xlu0 0
    %136 = vperm.xlu0 %135, %v82
    %v137 = vpop.permute.xlu0 %136
    %140 = vset.pattern.permute.xlu0 0
    %141 = vperm.xlu0 %140, %v83
    %v142 = vpop.permute.xlu0 %141
    %145 = vset.pattern.permute.xlu0 0
    %146 = vperm.xlu0 %145, %v84
    %v147 = vpop.permute.xlu0 %146
    %150 = vset.pattern.permute.xlu0 0
    %151 = vperm.xlu0 %150, %v85
    %v152 = vpop.permute.xlu0 %151
    %155 = vset.pattern.permute.xlu0 0
    %156 = vperm.xlu0 %155, %v86
    %v157 = vpop.permute.xlu0 %156
    %160 = vset.pattern.permute.xlu0 0
    %161 = vperm.xlu0 %160, %v87
    %v162 = vpop.permute.xlu0 %161
    %165 = vset.pattern.permute.xlu0 0
    %166 = vperm.xlu0 %165, %v88
    %v167 = vpop.permute.xlu0 %166
    %170 = vset.pattern.permute.xlu0 0
    %171 = vperm.xlu0 %170, %v89
    %v172 = vpop.permute.xlu0 %171
    %175 = vset.pattern.permute.xlu0 0
    %176 = vperm.xlu0 %175, %v90
    %v177 = vpop.permute.xlu0 %176
    %180 = vset.pattern.permute.xlu0 0
    %181 = vperm.xlu0 %180, %v91
    %v182 = vpop.permute.xlu0 %181
    %185 = vset.pattern.permute.xlu0 0
    %186 = vperm.xlu0 %185, %v92
    %v187 = vpop.permute.xlu0 %186
    %190 = vset.pattern.permute.xlu0 0
    %191 = vperm.xlu0 %190, %v93
    %v192 = vpop.permute.xlu0 %191
    %195 = vset.pattern.permute.xlu0 0
    %196 = vperm.xlu0 %195, %v94
    %v197 = vpop.permute.xlu0 %196
    %200 = vset.pattern.permute.xlu0 0
    %201 = vperm.xlu0 %200, %v95
    %v202 = vpop.permute.xlu0 %201
    %205 = vset.pattern.permute.xlu0 0
    %206 = vperm.xlu0 %205, %v96
    %v207 = vpop.permute.xlu0 %206
    %210 = vset.pattern.permute.xlu0 0
    %211 = vperm.xlu0 %210, %v97
    %v212 = vpop.permute.xlu0 %211
    %215 = vset.pattern.permute.xlu0 0
    %216 = vperm.xlu0 %215, %v98
    %v217 = vpop.permute.xlu0 %216
    %220 = vset.pattern.permute.xlu0 0
    %221 = vperm.xlu0 %220, %v99
    %v222 = vpop.permute.xlu0 %221
    %225 = vset.pattern.permute.xlu0 0
    %226 = vperm.xlu0 %225, %v100
    %v227 = vpop.permute.xlu0 %226
    %230 = vset.pattern.permute.xlu0 0
    %231 = vperm.xlu0 %230, %v101
    %v232 = vpop.permute.xlu0 %231
    %235 = vset.pattern.permute.xlu0 0
    %236 = vperm.xlu0 %235, %v102
    %v237 = vpop.permute.xlu0 %236
    %240 = vset.pattern.permute.xlu0 0
    %241 = vperm.xlu0 %240, %v103
    %v242 = vpop.permute.xlu0 %241
    %245 = vset.pattern.permute.xlu0 0
    %246 = vperm.xlu0 %245, %v104
    %v247 = vpop.permute.xlu0 %246
    %250 = vset.pattern.permute.xlu0 0
    %251 = vperm.xlu0 %250, %v105
    %v252 = vpop.permute.xlu0 %251
    %255 = vset.pattern.permute.xlu0 0
    %256 = vperm.xlu0 %255, %v106
    %v257 = vpop.permute.xlu0 %256
    %260 = vset.pattern.permute.xlu0 0
    %261 = vperm.xlu0 %260, %v107
    %v262 = vpop.permute.xlu0 %261
    %265 = vset.pattern.permute.xlu0 0
    %266 = vperm.xlu0 %265, %v108
    %v267 = vpop.permute.xlu0 %266
    %v301 = vunpack.c.l.b16 %v45
    %v302 = vunpack.c.l.b16 %v46
    %v303 = vunpack.c.l.b16 %v47
    %v304 = vunpack.c.l.b16 %v48
    %v305 = vunpack.c.l.b16 %v49
    %v306 = vunpack.c.l.b16 %v50
    %v307 = vunpack.c.l.b16 %v51
    %v308 = vunpack.c.l.b16 %v52
    %v309 = vunpack.c.l.b16 %v53
    %v310 = vunpack.c.l.b16 %v54
    %v311 = vunpack.c.l.b16 %v55
    %v312 = vunpack.c.l.b16 %v56
    %v313 = vunpack.c.l.b16 %v57
    %v314 = vunpack.c.l.b16 %v58
    %v315 = vunpack.c.l.b16 %v59
    %v316 = vunpack.c.l.b16 %v60
    %v317 = vunpack.c.l.b16 %v61
    %v318 = vunpack.c.l.b16 %v62
    %v319 = vunpack.c.l.b16 %v63
    %v320 = vunpack.c.l.b16 %v64
    %v321 = vunpack.c.l.b16 %v65
    %v322 = vunpack.c.l.b16 %v66
    %v323 = vunpack.c.l.b16 %v67
    %v324 = vunpack.c.l.b16 %v68
    %v325 = vunpack.c.l.b16 %v69
    %v326 = vunpack.c.l.b16 %v70
    %v327 = vunpack.c.l.b16 %v71
    %v328 = vunpack.c.l.b16 %v72
    %v329 = vunpack.c.l.b16 %v73
    %v330 = vunpack.c.l.b16 %v74
    %v331 = vunpack.c.l.b16 %v75
    %v332 = vunpack.c.l.b16 %v76
    %v333 = vpack.c.b16 %v302, %v301
    %v334 = vpack.c.b16 %v304, %v303
    %v335 = vpack.c.b16 %v306, %v305
    %v336 = vpack.c.b16 %v308, %v307
    %v337 = vpack.c.b16 %v310, %v309
    %v338 = vpack.c.b16 %v312, %v311
    %v339 = vpack.c.b16 %v314, %v313
    %v340 = vpack.c.b16 %v316, %v315
    %v341 = vpack.c.b16 %v318, %v317
    %v342 = vpack.c.b16 %v320, %v319
    %v343 = vpack.c.b16 %v322, %v321
    %v344 = vpack.c.b16 %v324, %v323
    %v345 = vpack.c.b16 %v326, %v325
    %v346 = vpack.c.b16 %v328, %v327
    %v347 = vpack.c.b16 %v330, %v329
    %v348 = vpack.c.b16 %v332, %v331
    %vm349 = vcmask 130048
    %v351 = vsel %vm349, %v333, 0
    %v354 = vsel %vm349, %v334, 0
    %v357 = vsel %vm349, %v335, 0
    %v360 = vsel %vm349, %v336, 0
    %v363 = vsel %vm349, %v337, 0
    %v366 = vsel %vm349, %v338, 0
    %v369 = vsel %vm349, %v339, 0
    %v372 = vsel %vm349, %v340, 0
    %v375 = vsel %vm349, %v341, 0
    %v378 = vsel %vm349, %v342, 0
    %v381 = vsel %vm349, %v343, 0
    %v384 = vsel %vm349, %v344, 0
    %v387 = vsel %vm349, %v345, 0
    %v390 = vsel %vm349, %v346, 0
    %v393 = vsel %vm349, %v347, 0
    %v396 = vsel %vm349, %v348, 0
    %v399 = vsel %vm349, %v37, 0
    %v402 = vsel %vm349, %v38, 0
    %v405 = vsel %vm349, %v39, 0
    %v408 = vsel %vm349, %v40, 0
    %v411 = vsel %vm349, %v41, 0
    %v414 = vsel %vm349, %v42, 0
    %v417 = vsel %vm349, %v43, 0
    %v420 = vsel %vm349, %v44, 0
    %422 = vmatpush.bf16.xpose.msra.mxu0 %v420
    %423 = vmatpush.bf16.xpose.msra.mxu0 %v417
    %424 = vmatpush.bf16.xpose.msra.mxu0 %v414
    %425 = vmatpush.bf16.xpose.msra.mxu0 %v411
    %426 = vmatpush.bf16.xpose.msra.mxu0 %v408
    %427 = vmatpush.bf16.xpose.msra.mxu0 %v405
    %428 = vmatpush.bf16.xpose.msra.mxu0 %v402
    %429 = vmatpush.bf16.xpose.msra.mxu0 %v399
    %430 = vmatmul.bf16.gmra.mxu0 %v351
    %v431 = vpop.f32.mrf.mxu0
    %v432 = vadd.f32 %v112, %v431
    %v433 = vpop.f32.mrf.mxu0
    %v434 = vadd.f32 %v117, %v433
    %435 = vmatmul.bf16.gmra.mxu0 %v354
    %v436 = vpop.f32.mrf.mxu0
    %v437 = vadd.f32 %v122, %v436
    %v438 = vpop.f32.mrf.mxu0
    %v439 = vadd.f32 %v127, %v438
    %440 = vmatmul.bf16.gmra.mxu0 %v357
    %v441 = vpop.f32.mrf.mxu0
    %v442 = vadd.f32 %v132, %v441
    %v443 = vpop.f32.mrf.mxu0
    %v444 = vadd.f32 %v137, %v443
    %445 = vmatmul.bf16.gmra.mxu0 %v360
    %v446 = vpop.f32.mrf.mxu0
    %v447 = vadd.f32 %v142, %v446
    %v448 = vpop.f32.mrf.mxu0
    %v449 = vadd.f32 %v147, %v448
    %450 = vmatmul.bf16.gmra.mxu0 %v363
    %v451 = vpop.f32.mrf.mxu0
    %v452 = vadd.f32 %v152, %v451
    %v453 = vpop.f32.mrf.mxu0
    %v454 = vadd.f32 %v157, %v453
    %455 = vmatmul.bf16.gmra.mxu0 %v366
    %v456 = vpop.f32.mrf.mxu0
    %v457 = vadd.f32 %v162, %v456
    %v458 = vpop.f32.mrf.mxu0
    %v459 = vadd.f32 %v167, %v458
    %460 = vmatmul.bf16.gmra.mxu0 %v369
    %v461 = vpop.f32.mrf.mxu0
    %v462 = vadd.f32 %v172, %v461
    %v463 = vpop.f32.mrf.mxu0
    %v464 = vadd.f32 %v177, %v463
    %465 = vmatmul.bf16.gmra.mxu0 %v372
    %v466 = vpop.f32.mrf.mxu0
    %v467 = vadd.f32 %v182, %v466
    %v468 = vpop.f32.mrf.mxu0
    %v469 = vadd.f32 %v187, %v468
    %470 = vmatmul.bf16.gmra.mxu0 %v375
    %v471 = vpop.f32.mrf.mxu0
    %v472 = vadd.f32 %v192, %v471
    %v473 = vpop.f32.mrf.mxu0
    %v474 = vadd.f32 %v197, %v473
    %475 = vmatmul.bf16.gmra.mxu0 %v378
    %v476 = vpop.f32.mrf.mxu0
    %v477 = vadd.f32 %v202, %v476
    %v478 = vpop.f32.mrf.mxu0
    %v479 = vadd.f32 %v207, %v478
    %480 = vmatmul.bf16.gmra.mxu0 %v381
    %v481 = vpop.f32.mrf.mxu0
    %v482 = vadd.f32 %v212, %v481
    %v483 = vpop.f32.mrf.mxu0
    %v484 = vadd.f32 %v217, %v483
    %485 = vmatmul.bf16.gmra.mxu0 %v384
    %v486 = vpop.f32.mrf.mxu0
    %v487 = vadd.f32 %v222, %v486
    %v488 = vpop.f32.mrf.mxu0
    %v489 = vadd.f32 %v227, %v488
    %490 = vmatmul.bf16.gmra.mxu0 %v387
    %v491 = vpop.f32.mrf.mxu0
    %v492 = vadd.f32 %v232, %v491
    %v493 = vpop.f32.mrf.mxu0
    %v494 = vadd.f32 %v237, %v493
    %495 = vmatmul.bf16.gmra.mxu0 %v390
    %v496 = vpop.f32.mrf.mxu0
    %v497 = vadd.f32 %v242, %v496
    %v498 = vpop.f32.mrf.mxu0
    %v499 = vadd.f32 %v247, %v498
    %500 = vmatmul.bf16.gmra.mxu0 %v393
    %v501 = vpop.f32.mrf.mxu0
    %v502 = vadd.f32 %v252, %v501
    %v503 = vpop.f32.mrf.mxu0
    %v504 = vadd.f32 %v257, %v503
    %505 = vmatmul.bf16.gmra.mxu0 %v396
    %v506 = vpop.f32.mrf.mxu0
    %v507 = vadd.f32 %v262, %v506
    %v508 = vpop.f32.mrf.mxu0
    %v509 = vadd.f32 %v267, %v508
    %510 = vdwg.mxu0
    %v511 = vmax.f32 %v432, 0.0
    %v512 = vmax.f32 %v434, 0.0
    %v513 = vmax.f32 %v437, 0.0
    %v514 = vmax.f32 %v439, 0.0
    %v515 = vmax.f32 %v442, 0.0
    %v516 = vmax.f32 %v444, 0.0
    %v517 = vmax.f32 %v447, 0.0
    %v518 = vmax.f32 %v449, 0.0
    %v519 = vmax.f32 %v452, 0.0
    %v520 = vmax.f32 %v454, 0.0
    %v521 = vmax.f32 %v457, 0.0
    %v522 = vmax.f32 %v459, 0.0
    %v523 = vmax.f32 %v462, 0.0
    %v524 = vmax.f32 %v464, 0.0
    %v525 = vmax.f32 %v467, 0.0
    %v526 = vmax.f32 %v469, 0.0
    %v527 = vmax.f32 %v472, 0.0
    %v528 = vmax.f32 %v474, 0.0
    %v529 = vmax.f32 %v477, 0.0
    %v530 = vmax.f32 %v479, 0.0
    %v531 = vmax.f32 %v482, 0.0
    %v532 = vmax.f32 %v484, 0.0
    %v533 = vmax.f32 %v487, 0.0
    %v534 = vmax.f32 %v489, 0.0
    %v535 = vmax.f32 %v492, 0.0
    %v536 = vmax.f32 %v494, 0.0
    %v537 = vmax.f32 %v497, 0.0
    %v538 = vmax.f32 %v499, 0.0
    %v539 = vmax.f32 %v502, 0.0
    %v540 = vmax.f32 %v504, 0.0
    %v541 = vmax.f32 %v507, 0.0
    %v542 = vmax.f32 %v509, 0.0
    %v543 = vpack.c.bf16 %v512, %v511
    %v544 = vpack.c.bf16 %v514, %v513
    %v545 = vpack.c.bf16 %v516, %v515
    %v546 = vpack.c.bf16 %v518, %v517
    %v547 = vpack.c.bf16 %v520, %v519
    %v548 = vpack.c.bf16 %v522, %v521
    %v549 = vpack.c.bf16 %v524, %v523
    %v550 = vpack.c.bf16 %v526, %v525
    %v551 = vpack.c.bf16 %v528, %v527
    %v552 = vpack.c.bf16 %v530, %v529
    %v553 = vpack.c.bf16 %v532, %v531
    %v554 = vpack.c.bf16 %v534, %v533
    %v555 = vpack.c.bf16 %v536, %v535
    %v556 = vpack.c.bf16 %v538, %v537
    %v557 = vpack.c.bf16 %v540, %v539
    %v558 = vpack.c.bf16 %v542, %v541
    %v559 = vld [vmem:[%s3] sm:$0xff]
    %v560 = vld [vmem:[%s4] sm:$0xff]
    %562 = vset.pattern.permute.xlu0 0
    %563 = vperm.xlu0 %562, %v560
    %v564 = vpop.permute.xlu0 %563
    %v567 = vunpack.c.l.b16 %v559
    %v568 = vunpack.c.h.b16 %v559
    %v569 = vpack.c.b16 %v567, %v567
    %v570 = vpack.c.b16 %v568, %v568
    %573 = vmatpush.bf16.msra.mxu0 %v550
    %574 = vmatpush.bf16.msra.mxu0 %v549
    %575 = vmatpush.bf16.msra.mxu0 %v548
    %576 = vmatpush.bf16.msra.mxu0 %v547
    %577 = vmatpush.bf16.msra.mxu0 %v546
    %578 = vmatpush.bf16.msra.mxu0 %v545
    %579 = vmatpush.bf16.msra.mxu0 %v544
    %580 = vmatpush.bf16.msra.mxu0 %v543
    %581 = vmatmul.bf16.gmra.mxu0 %v569
    %v582 = vpop.f32.mrf.mxu0
    %v583 = vadd.f32 %v564, %v582
    %v584 = vpop.f32.mrf.mxu0
    %585 = vdwg.mxu0
    %586 = vmatpush.bf16.msra.mxu0 %v558
    %587 = vmatpush.bf16.msra.mxu0 %v557
    %588 = vmatpush.bf16.msra.mxu0 %v556
    %589 = vmatpush.bf16.msra.mxu0 %v555
    %590 = vmatpush.bf16.msra.mxu0 %v554
    %591 = vmatpush.bf16.msra.mxu0 %v553
    %592 = vmatpush.bf16.msra.mxu0 %v552
    %593 = vmatpush.bf16.msra.mxu0 %v551
    %594 = vmatmul.bf16.gmra.mxu0 %v570
    %v595 = vpop.f32.mrf.mxu0
    %v596 = vadd.f32 %v583, %v595
    %v597 = vpop.f32.mrf.mxu0
    %598 = vdwg.mxu0
    %599 = vst [vmem:[#allocation2] sm:$0xff] %v596
    // Predicated region
    $region22: #{tpu_custom_call.1} parent=1 // pred_check
      _
    $region23: #{tpu_custom_call.1} parent=1 // pred_check_branch
      %601 = sbr.rel (0) target = $region25
    $region24: #{tpu_custom_call.1} parent=1 // pred_region
      %603 = vsyncadd [#allocation3], 0
      %s605 = sshll.u32 [#allocation2], 4
      %s606 = int_to_ptr.vmem [resolvable:$true] %s605
      %s607 = sshll.u32 %s5, 4
      %s608 = int_to_ptr.hbm [resolvable:$true] %s607
      %610 = dma.vmem_to_hbm [thread:$0]  %s606, 128, %s608, [#allocation3]
    $region25: #{tpu_custom_call.1} parent=1 // pred_fallthru
      _
    // Predicated region
    $region26: #{tpu_custom_call.1} parent=1 // pred_check
      _
    $region27: #{tpu_custom_call.1} parent=1 // pred_check_branch
      %612 = sbr.rel (0) target = $region29
    $region28: #{tpu_custom_call.1} parent=1 // pred_region
      %614 = dma.done [#allocation3], 128
    $region29: #{tpu_custom_call.1} parent=1 // pred_fallthru
      _
    %615 = vsyncpa [#allocation3], 1

</llo_original>
